<compile_context>
chip_gen: v5e
topology: v5e:2x2
jax: 0.10.0
libtpu: 0.0.40
codegen_flags: <defaults>
</compile_context>

<pallas_src>
import functools
import re

import jax
import jax.numpy as jnp
from jax.experimental import pallas as pl
from jax.experimental.pallas import tpu as pltpu

_LANE = 128      # lane width (last-dim granularity)
_SUBLANE = 8     # f32 sublane granularity (second-to-last dim)


def _round_up(x, m):
    return ((x + m - 1) // m) * m


def _cdiv(a, b):
    return (a + b - 1) // b


def _tpu_generation():
    """Best-effort TPU generation (5, 6, 7, ...); 0 if unknown / not a TPU."""
    try:
        dev = jax.devices()[0]
        if dev.platform != "tpu":
            return 0
        m = re.search(r"v(\d+)", dev.device_kind.lower())
        return int(m.group(1)) if m else 0
    except Exception:
        return 0


def _vmem_capacity_bytes(generation):
    """Physical per-core VMEM, queried when possible, else generation-based guess."""
    try:
        return int(pltpu.get_tpu_info().vmem_capacity_bytes)
    except Exception:
        if generation >= 7:
            return 64 << 20      # v7x: 64 MiB per TensorCore
        if generation == 0:
            return 64 << 20      # unknown -> conservative
        return 128 << 20         # v5e / v6e: 128 MiB


# ---------------------------------------------------------------------------
# Kernel
# ---------------------------------------------------------------------------
def _actor_kernel(x_ref, w1_ref, b1_ref, w2_ref, b2_ref, w3_ref, b3_ref,
                  out_ref, *, max_action, bf16_epilogue):
    # Layer 1: Linear + ReLU.  bf16 MXU inputs, f32 accumulation.
    x = x_ref[...].astype(jnp.bfloat16)
    h = jnp.dot(x, w1_ref[...], preferred_element_type=jnp.float32)
    if bf16_epilogue:
        # v6e/v7x: bf16 packed VPU -> half the VALU ops / intermediate bytes.
        h = jnp.maximum(h.astype(jnp.bfloat16) + b1_ref[...].astype(jnp.bfloat16), 0)
    else:
        # v5e: no bf16 VPU -> keep the elementwise epilogue in f32.
        h = jnp.maximum(h + b1_ref[...], 0.0).astype(jnp.bfloat16)

    # Layer 2: Linear + ReLU  (n_hidden=2 -> one extra hidden layer).
    h = jnp.dot(h, w2_ref[...], preferred_element_type=jnp.float32)
    if bf16_epilogue:
        h = jnp.maximum(h.astype(jnp.bfloat16) + b2_ref[...].astype(jnp.bfloat16), 0)
    else:
        h = jnp.maximum(h + b2_ref[...], 0.0).astype(jnp.bfloat16)

    # Output layer: Linear + Tanh (f32), scaled by max_action.
    a = jnp.dot(h, w3_ref[...], preferred_element_type=jnp.float32)
    a = jnp.tanh(a + b3_ref[...])
    out_ref[...] = (max_action * a).astype(out_ref.dtype)   # lane-dense (tb, A_pad) store


# ---------------------------------------------------------------------------
# VMEM accounting & tile selection
# ---------------------------------------------------------------------------
def _vmem_estimate(tb, s_pad, h_pad, a_pad, state_bytes, out_bytes, w_bufs=2):
    """Rough VMEM footprint (bytes): streamed tiles (double-buffered) + resident
    weights/biases + hidden-activation intermediates."""
    stream = 2 * tb * (s_pad * state_bytes + a_pad * out_bytes)
    weights = w_bufs * 2 * (s_pad * h_pad + h_pad * h_pad + h_pad * a_pad)   # bf16
    biases = w_bufs * 4 * (2 * h_pad + a_pad)                                # f32
    acts = 2 * tb * h_pad * 4
    return stream + weights + biases + acts


def _choose_tile(B, s_pad, h_pad, a_pad, state_bytes, out_bytes,
                 block_b, min_tiles, budget):
    """Balanced batch tile: minimizes padding waste, guarantees >= min_tiles grid
    steps when the batch allows, and respects the VMEM budget."""
    ntiles = max(_cdiv(B, block_b), min_tiles)
    # Each tile must hold at least one real sublane of rows.
    ntiles = min(ntiles, max(1, _cdiv(B, _SUBLANE)))
    # Prefer an even number of steps when sharding across 2 cores (v7x).
    if min_tiles >= 2 and ntiles > 1 and ntiles % 2 == 1 \
            and ntiles + 1 <= _cdiv(B, _SUBLANE):
        ntiles += 1
    tb = _round_up(_cdiv(B, ntiles), _SUBLANE)
    while tb > _SUBLANE and _vmem_estimate(tb, s_pad, h_pad, a_pad,
                                           state_bytes, out_bytes) > budget:
        tb = _round_up(_cdiv(tb, 2), _SUBLANE)
    return tb


# ---------------------------------------------------------------------------
# Wrapper
# ---------------------------------------------------------------------------
def actor_forward(state, padded_params, max_action, action_dim, *,
                  block_b=1024, out_dtype=jnp.float32):
    """state: (B, state_dim), f32 or bf16.  padded_params: output of pad_params().
    Returns (B, action_dim) in out_dtype (f32 by default; pass bf16 if downstream
    accepts it to halve output DMA bytes)."""
    w1, b1, w2, b2, w3, b3 = padded_params
    B, state_dim = state.shape
    s_pad, h_pad = w1.shape
    a_pad = w3.shape[1]

    # Contract checks: padded params must be 128-multiples with zero-filled padding
    # (pad_params guarantees the zero fill; here we at least verify the shapes).
    assert s_pad % _LANE == 0 and h_pad % _LANE == 0 and a_pad % _LANE == 0, \
        "padded params must have 128-multiple feature dims (use pad_params)"
    assert w2.shape == (h_pad, h_pad) and w3.shape == (h_pad, a_pad)
    assert b1.shape == (1, h_pad) and b2.shape == (1, h_pad) and b3.shape == (1, a_pad)
    assert state_dim <= s_pad and action_dim <= a_pad

    generation = _tpu_generation()
    bf16_epilogue = generation >= 6          # v6e/v7x have bf16 VPU; v5e does not
    min_tiles = 2 if generation >= 7 else 1  # keep both v7x TensorCores busy
    capacity = _vmem_capacity_bytes(generation)
    budget = (capacity * 3) // 4             # ~96 MiB on v5e/v6e, ~48 MiB on v7x

    # Zero-pad the state feature dim (matching zero rows in w1 => numerics unchanged).
    if state_dim != s_pad:
        state = jnp.pad(state, ((0, 0), (0, s_pad - state_dim)))
    state_bytes = jnp.dtype(state.dtype).itemsize
    out_bytes = jnp.dtype(out_dtype).itemsize

    tb = _choose_tile(B, s_pad, h_pad, a_pad, state_bytes, out_bytes,
                      block_b, min_tiles, budget)
    b_padded = _round_up(B, tb)
    if b_padded != B:
        state = jnp.pad(state, ((0, b_padded - B), (0, 0)))
    grid = (b_padded // tb,)

    vmem_limit = int(min(max(2 * _vmem_estimate(tb, s_pad, h_pad, a_pad,
                                                state_bytes, out_bytes),
                             32 << 20), budget))

    weight_elems = s_pad * h_pad + h_pad * h_pad + h_pad * a_pad
    cost = pl.CostEstimate(
        flops=2 * b_padded * weight_elems,
        transcendentals=b_padded * a_pad,
        bytes_accessed=(b_padded * s_pad * state_bytes
                        + b_padded * a_pad * out_bytes
                        + 2 * weight_elems + 4 * (2 * h_pad + a_pad)),
    )

    def _in_specs(resident_mode):
        if resident_mode is None:
            def resident(shape):
                return pl.BlockSpec(shape, lambda i: (0, 0))
        else:
            def resident(shape):
                return pl.BlockSpec(shape, lambda i: (0, 0),
                                    pipeline_mode=resident_mode)
        return [
            pl.BlockSpec((tb, s_pad), lambda i: (i, 0)),   # streamed state tile
            resident((s_pad, h_pad)),                      # resident weights / biases
            resident((1, h_pad)),
            resident((h_pad, h_pad)),
            resident((1, h_pad)),
            resident((h_pad, a_pad)),
            resident((1, a_pad)),
        ]

    def _run(resident_mode):
        return pl.pallas_call(
            functools.partial(_actor_kernel, max_action=float(max_action),
                              bf16_epilogue=bf16_epilogue),
            out_shape=jax.ShapeDtypeStruct((b_padded, a_pad), out_dtype),
            grid=grid,
            in_specs=_in_specs(resident_mode),
            out_specs=pl.BlockSpec((tb, a_pad), lambda i: (i, 0)),
            compiler_params=pltpu.CompilerParams(
                dimension_semantics=("parallel",),
                vmem_limit_bytes=vmem_limit),
            cost_estimate=cost,
        )(state, w1, b1, w2, b2, w3, b3)

    # Constant-index blocks never re-DMA: request single buffering to halve their
    # resident VMEM.  Fall back to the default pipeline if this JAX build rejects it.
    buffered = getattr(pl, "Buffered", None)
    if buffered is not None:
        try:
            out = _run(buffered(1))
        except Exception:
            out = _run(None)
    else:
        out = _run(None)

    return out[:B, :action_dim]


# ---------------------------------------------------------------------------
# Params (logical + padded) and pure-JAX reference
# ---------------------------------------------------------------------------
def init_actor_params(key, state_dim, hidden_dim, action_dim):
    """Logical f32 params mimicking torch.nn.Linear default init (U(+-1/sqrt(fan_in))).
    Weights are (in_features, out_features) (transposed vs torch), biases (1, out)."""
    def linear(k, fan_in, fan_out):
        kw, kb = jax.random.split(k)
        bound = 1.0 / jnp.sqrt(fan_in)
        w = jax.random.uniform(kw, (fan_in, fan_out), jnp.float32, -bound, bound)
        b = jax.random.uniform(kb, (1, fan_out), jnp.float32, -bound, bound)
        return w, b

    k1, k2, k3 = jax.random.split(key, 3)
    w1, b1 = linear(k1, state_dim, hidden_dim)
    w2, b2 = linear(k2, hidden_dim, hidden_dim)
    w3, b3 = linear(k3, hidden_dim, action_dim)
    return (w1, b1, w2, b2, w3, b3)


def pad_params(params):
    """Zero-pad every feature dim to a multiple of 128; weights -> bf16, biases -> f32.
    The zero padding keeps valid lanes numerically identical (kernel relies on it)."""
    w1, b1, w2, b2, w3, b3 = params

    def pad_w(w):
        i, o = w.shape
        return jnp.pad(w, ((0, _round_up(i, _LANE) - i),
                           (0, _round_up(o, _LANE) - o))).astype(jnp.bfloat16)

    def pad_b(b):
        o = b.shape[1]
        return jnp.pad(b, ((0, 0), (0, _round_up(o, _LANE) - o))).astype(jnp.float32)

    return (pad_w(w1), pad_b(b1), pad_w(w2), pad_b(b2), pad_w(w3), pad_b(b3))


def actor_reference(state, params, max_action):
    """Pure-JAX f32 reference of the PyTorch module."""
    w1, b1, w2, b2, w3, b3 = params
    h = jnp.maximum(state @ w1 + b1, 0.0)
    h = jnp.maximum(h @ w2 + b2, 0.0)
    return max_action * jnp.tanh(h @ w3 + b3)


if __name__ == "__main__":
    # Small shapes consistent with the module: state vector -> action vector.
    batch = 2
    state_dim = 16
    hidden_dim = 32
    action_dim = 4
    max_action = 1.5

    key = jax.random.PRNGKey(0)
    k_params, k_state, k_state2 = jax.random.split(key, 3)
    params = init_actor_params(k_params, state_dim, hidden_dim, action_dim)
    padded = pad_params(params)

    # Case 1: tiny batch (single grid step).
    state = jax.random.normal(k_state, (batch, state_dim), jnp.float32)
    out = jax.block_until_ready(actor_forward(state, padded, max_action, action_dim))
    ref = actor_reference(state, params, max_action)
    assert out.shape == (batch, action_dim)
    # bf16 MXU inputs (and bf16 epilogues on v6e/v7x) vs the f32 reference: tolerance
    # covers bf16 rounding but still catches real bugs.
    assert jnp.allclose(out, ref, atol=3e-2, rtol=3e-2), "mismatch vs reference (case 1)"

    # Case 2: multi-tile grid with a ragged last tile (balanced-tile + padding path).
    batch2 = 300
    state2 = jax.random.normal(k_state2, (batch2, state_dim), jnp.float32)
    out2 = jax.block_until_ready(
        actor_forward(state2, padded, max_action, action_dim, block_b=128))
    ref2 = actor_reference(state2, params, max_action)
    assert out2.shape == (batch2, action_dim)
    assert jnp.allclose(out2, ref2, atol=3e-2, rtol=3e-2), "mismatch vs reference (case 2)"

    print("KERNEL_OK")
</pallas_src>

<mosaic_0001>
module attributes {stable_mosaic.version = 11 : i64} {
  func.func @_actor_kernel(%arg0: i32, %arg1: memref<8x128xf32, #tpu.memory_space<vmem>>, %arg2: memref<128x128xbf16, #tpu.memory_space<vmem>>, %arg3: memref<1x128xf32, #tpu.memory_space<vmem>>, %arg4: memref<128x128xbf16, #tpu.memory_space<vmem>>, %arg5: memref<1x128xf32, #tpu.memory_space<vmem>>, %arg6: memref<128x128xbf16, #tpu.memory_space<vmem>>, %arg7: memref<1x128xf32, #tpu.memory_space<vmem>>, %arg8: memref<8x128xf32, #tpu.memory_space<vmem>>) attributes {dimension_semantics = [#tpu.dimension_semantics<parallel>], iteration_bounds = array<i64: 1>, scalar_prefetch = 0 : i64, scratch_operands = 0 : i64, tpu.core_type = #tpu.core_type<tc>, window_params = [{transform_indices = @transform_0, window_bounds = array<i64: 8, 128>}, {pipeline_mode = #tpu.pipeline_mode<synchronous>, transform_indices = @transform_1, window_bounds = array<i64: 128, 128>}, {pipeline_mode = #tpu.pipeline_mode<synchronous>, transform_indices = @transform_2, window_bounds = array<i64: 1, 128>}, {pipeline_mode = #tpu.pipeline_mode<synchronous>, transform_indices = @transform_3, window_bounds = array<i64: 128, 128>}, {pipeline_mode = #tpu.pipeline_mode<synchronous>, transform_indices = @transform_4, window_bounds = array<i64: 1, 128>}, {pipeline_mode = #tpu.pipeline_mode<synchronous>, transform_indices = @transform_5, window_bounds = array<i64: 128, 128>}, {pipeline_mode = #tpu.pipeline_mode<synchronous>, transform_indices = @transform_6, window_bounds = array<i64: 1, 128>}, {transform_indices = @transform_7, window_bounds = array<i64: 8, 128>}]} {
    %c0 = arith.constant 0 : index
    %c0_0 = arith.constant 0 : index
    %0 = vector.load %arg1[%c0, %c0_0] : memref<8x128xf32, #tpu.memory_space<vmem>>, vector<8x128xf32>
    %1 = arith.truncf %0 : vector<8x128xf32> to vector<8x128xbf16>
    %c0_1 = arith.constant 0 : index
    %c0_2 = arith.constant 0 : index
    %2 = vector.load %arg2[%c0_1, %c0_2] : memref<128x128xbf16, #tpu.memory_space<vmem>>, vector<128x128xbf16>
    %cst = arith.constant dense<0.000000e+00> : vector<8x128xf32>
    %3 = tpu.matmul %1, %2, %cst {dimension_numbers = #tpu.dot_dimension_numbers<[1], [0], [0], [1], [0, 0, 1, 1], [], []>} : vector<8x128xbf16>, vector<128x128xbf16>, vector<8x128xf32> -> vector<8x128xf32>
    %c0_3 = arith.constant 0 : index
    %c0_4 = arith.constant 0 : index
    %4 = vector.load %arg3[%c0_3, %c0_4] : memref<1x128xf32, #tpu.memory_space<vmem>>, vector<1x128xf32>
    %5 = vector.broadcast %4 : vector<1x128xf32> to vector<8x128xf32>
    %6 = arith.addf %3, %5 : vector<8x128xf32>
    %cst_5 = arith.constant 0.000000e+00 : f32
    %7 = vector.broadcast %cst_5 : f32 to vector<8x128xf32>
    %8 = arith.maximumf %6, %7 : vector<8x128xf32>
    %9 = arith.truncf %8 : vector<8x128xf32> to vector<8x128xbf16>
    %c0_6 = arith.constant 0 : index
    %c0_7 = arith.constant 0 : index
    %10 = vector.load %arg4[%c0_6, %c0_7] : memref<128x128xbf16, #tpu.memory_space<vmem>>, vector<128x128xbf16>
    %cst_8 = arith.constant dense<0.000000e+00> : vector<8x128xf32>
    %11 = tpu.matmul %9, %10, %cst_8 {dimension_numbers = #tpu.dot_dimension_numbers<[1], [0], [0], [1], [0, 0, 1, 1], [], []>} : vector<8x128xbf16>, vector<128x128xbf16>, vector<8x128xf32> -> vector<8x128xf32>
    %c0_9 = arith.constant 0 : index
    %c0_10 = arith.constant 0 : index
    %12 = vector.load %arg5[%c0_9, %c0_10] : memref<1x128xf32, #tpu.memory_space<vmem>>, vector<1x128xf32>
    %13 = vector.broadcast %12 : vector<1x128xf32> to vector<8x128xf32>
    %14 = arith.addf %11, %13 : vector<8x128xf32>
    %cst_11 = arith.constant 0.000000e+00 : f32
    %15 = vector.broadcast %cst_11 : f32 to vector<8x128xf32>
    %16 = arith.maximumf %14, %15 : vector<8x128xf32>
    %17 = arith.truncf %16 : vector<8x128xf32> to vector<8x128xbf16>
    %c0_12 = arith.constant 0 : index
    %c0_13 = arith.constant 0 : index
    %18 = vector.load %arg6[%c0_12, %c0_13] : memref<128x128xbf16, #tpu.memory_space<vmem>>, vector<128x128xbf16>
    %cst_14 = arith.constant dense<0.000000e+00> : vector<8x128xf32>
    %19 = tpu.matmul %17, %18, %cst_14 {dimension_numbers = #tpu.dot_dimension_numbers<[1], [0], [0], [1], [0, 0, 1, 1], [], []>} : vector<8x128xbf16>, vector<128x128xbf16>, vector<8x128xf32> -> vector<8x128xf32>
    %c0_15 = arith.constant 0 : index
    %c0_16 = arith.constant 0 : index
    %20 = vector.load %arg7[%c0_15, %c0_16] : memref<1x128xf32, #tpu.memory_space<vmem>>, vector<1x128xf32>
    %21 = vector.broadcast %20 : vector<1x128xf32> to vector<8x128xf32>
    %22 = arith.addf %19, %21 : vector<8x128xf32>
    %23 = math.tanh %22 : vector<8x128xf32>
    %cst_17 = arith.constant 1.500000e+00 : f32
    %24 = vector.broadcast %cst_17 : f32 to vector<8x128xf32>
    %25 = arith.mulf %24, %23 : vector<8x128xf32>
    %c0_18 = arith.constant 0 : index
    %c0_19 = arith.constant 0 : index
    %26 = vector.load %arg8[%c0_18, %c0_19] : memref<8x128xf32, #tpu.memory_space<vmem>>, vector<8x128xf32>
    tpu.vector_store %arg8[%c0_18, %c0_19], %25 {strides = array<i32>} : memref<8x128xf32, #tpu.memory_space<vmem>>, vector<8x128xf32>,
    return
  }
  func.func @transform_0(%arg0: i32) -> (i32, i32) {
    %c0_i32 = arith.constant 0 : i32
    %c0_i32_0 = arith.constant 0 : i32
    return %arg0, %c0_i32 : i32, i32
  }
  func.func @transform_1(%arg0: i32) -> (i32, i32) {
    %c0_i32 = arith.constant 0 : i32
    %c0_i32_0 = arith.constant 0 : i32
    %c0_i32_1 = arith.constant 0 : i32
    return %c0_i32, %c0_i32_0 : i32, i32
  }
  func.func @transform_2(%arg0: i32) -> (i32, i32) {
    %c0_i32 = arith.constant 0 : i32
    %c0_i32_0 = arith.constant 0 : i32
    %c0_i32_1 = arith.constant 0 : i32
    return %c0_i32, %c0_i32_0 : i32, i32
  }
  func.func @transform_3(%arg0: i32) -> (i32, i32) {
    %c0_i32 = arith.constant 0 : i32
    %c0_i32_0 = arith.constant 0 : i32
    %c0_i32_1 = arith.constant 0 : i32
    return %c0_i32, %c0_i32_0 : i32, i32
  }
  func.func @transform_4(%arg0: i32) -> (i32, i32) {
    %c0_i32 = arith.constant 0 : i32
    %c0_i32_0 = arith.constant 0 : i32
    %c0_i32_1 = arith.constant 0 : i32
    return %c0_i32, %c0_i32_0 : i32, i32
  }
  func.func @transform_5(%arg0: i32) -> (i32, i32) {
    %c0_i32 = arith.constant 0 : i32
    %c0_i32_0 = arith.constant 0 : i32
    %c0_i32_1 = arith.constant 0 : i32
    return %c0_i32, %c0_i32_0 : i32, i32
  }
  func.func @transform_6(%arg0: i32) -> (i32, i32) {
    %c0_i32 = arith.constant 0 : i32
    %c0_i32_0 = arith.constant 0 : i32
    %c0_i32_1 = arith.constant 0 : i32
    return %c0_i32, %c0_i32_0 : i32, i32
  }
  func.func @transform_7(%arg0: i32) -> (i32, i32) {
    %c0_i32 = arith.constant 0 : i32
    %c0_i32_0 = arith.constant 0 : i32
    return %arg0, %c0_i32 : i32, i32
  }
}

module attributes {stable_mosaic.version = 11 : i64} {
  func.func @_actor_kernel(%arg0: i32, %arg1: memref<8x128xf32, #tpu.memory_space<vmem>>, %arg2: memref<128x128xbf16, #tpu.memory_space<vmem>>, %arg3: memref<1x128xf32, #tpu.memory_space<vmem>>, %arg4: memref<128x128xbf16, #tpu.memory_space<vmem>>, %arg5: memref<1x128xf32, #tpu.memory_space<vmem>>, %arg6: memref<128x128xbf16, #tpu.memory_space<vmem>>, %arg7: memref<1x128xf32, #tpu.memory_space<vmem>>, %arg8: memref<8x128xf32, #tpu.memory_space<vmem>>) attributes {dimension_semantics = [#tpu.dimension_semantics<parallel>], iteration_bounds = array<i64: 1>, scalar_prefetch = 0 : i64, scratch_operands = 0 : i64, tpu.core_type = #tpu.core_type<tc>, window_params = [{transform_indices = @transform_0, window_bounds = array<i64: 8, 128>}, {pipeline_mode = #tpu.pipeline_mode<synchronous>, transform_indices = @transform_1, window_bounds = array<i64: 128, 128>}, {pipeline_mode = #tpu.pipeline_mode<synchronous>, transform_indices = @transform_2, window_bounds = array<i64: 1, 128>}, {pipeline_mode = #tpu.pipeline_mode<synchronous>, transform_indices = @transform_3, window_bounds = array<i64: 128, 128>}, {pipeline_mode = #tpu.pipeline_mode<synchronous>, transform_indices = @transform_4, window_bounds = array<i64: 1, 128>}, {pipeline_mode = #tpu.pipeline_mode<synchronous>, transform_indices = @transform_5, window_bounds = array<i64: 128, 128>}, {pipeline_mode = #tpu.pipeline_mode<synchronous>, transform_indices = @transform_6, window_bounds = array<i64: 1, 128>}, {transform_indices = @transform_7, window_bounds = array<i64: 8, 128>}]} {
    %c0 = arith.constant 0 : index
    %c0_0 = arith.constant 0 : index
    %0 = vector.load %arg1[%c0, %c0_0] : memref<8x128xf32, #tpu.memory_space<vmem>>, vector<8x128xf32>
    %1 = arith.truncf %0 : vector<8x128xf32> to vector<8x128xbf16>
    %c0_1 = arith.constant 0 : index
    %c0_2 = arith.constant 0 : index
    %2 = vector.load %arg2[%c0_1, %c0_2] : memref<128x128xbf16, #tpu.memory_space<vmem>>, vector<128x128xbf16>
    %cst = arith.constant dense<0.000000e+00> : vector<8x128xf32>
    %3 = tpu.matmul %1, %2, %cst {dimension_numbers = #tpu.dot_dimension_numbers<[1], [0], [0], [1], [0, 0, 1, 1], [], []>} : vector<8x128xbf16>, vector<128x128xbf16>, vector<8x128xf32> -> vector<8x128xf32>
    %c0_3 = arith.constant 0 : index
    %c0_4 = arith.constant 0 : index
    %4 = vector.load %arg3[%c0_3, %c0_4] : memref<1x128xf32, #tpu.memory_space<vmem>>, vector<1x128xf32>
    %5 = vector.broadcast %4 : vector<1x128xf32> to vector<8x128xf32>
    %6 = arith.addf %3, %5 : vector<8x128xf32>
    %cst_5 = arith.constant 0.000000e+00 : f32
    %7 = vector.broadcast %cst_5 : f32 to vector<8x128xf32>
    %8 = arith.maximumf %6, %7 : vector<8x128xf32>
    %9 = arith.truncf %8 : vector<8x128xf32> to vector<8x128xbf16>
    %c0_6 = arith.constant 0 : index
    %c0_7 = arith.constant 0 : index
    %10 = vector.load %arg4[%c0_6, %c0_7] : memref<128x128xbf16, #tpu.memory_space<vmem>>, vector<128x128xbf16>
    %cst_8 = arith.constant dense<0.000000e+00> : vector<8x128xf32>
    %11 = tpu.matmul %9, %10, %cst_8 {dimension_numbers = #tpu.dot_dimension_numbers<[1], [0], [0], [1], [0, 0, 1, 1], [], []>} : vector<8x128xbf16>, vector<128x128xbf16>, vector<8x128xf32> -> vector<8x128xf32>
    %c0_9 = arith.constant 0 : index
    %c0_10 = arith.constant 0 : index
    %12 = vector.load %arg5[%c0_9, %c0_10] : memref<1x128xf32, #tpu.memory_space<vmem>>, vector<1x128xf32>
    %13 = vector.broadcast %12 : vector<1x128xf32> to vector<8x128xf32>
    %14 = arith.addf %11, %13 : vector<8x128xf32>
    %cst_11 = arith.constant 0.000000e+00 : f32
    %15 = vector.broadcast %cst_11 : f32 to vector<8x128xf32>
    %16 = arith.maximumf %14, %15 : vector<8x128xf32>
    %17 = arith.truncf %16 : vector<8x128xf32> to vector<8x128xbf16>
    %c0_12 = arith.constant 0 : index
    %c0_13 = arith.constant 0 : index
    %18 = vector.load %arg6[%c0_12, %c0_13] : memref<128x128xbf16, #tpu.memory_space<vmem>>, vector<128x128xbf16>
    %cst_14 = arith.constant dense<0.000000e+00> : vector<8x128xf32>
    %19 = tpu.matmul %17, %18, %cst_14 {dimension_numbers = #tpu.dot_dimension_numbers<[1], [0], [0], [1], [0, 0, 1, 1], [], []>} : vector<8x128xbf16>, vector<128x128xbf16>, vector<8x128xf32> -> vector<8x128xf32>
    %c0_15 = arith.constant 0 : index
    %c0_16 = arith.constant 0 : index
    %20 = vector.load %arg7[%c0_15, %c0_16] : memref<1x128xf32, #tpu.memory_space<vmem>>, vector<1x128xf32>
    %21 = vector.broadcast %20 : vector<1x128xf32> to vector<8x128xf32>
    %22 = arith.addf %19, %21 : vector<8x128xf32>
    %23 = math.tanh %22 : vector<8x128xf32>
    %cst_17 = arith.constant 1.500000e+00 : f32
    %24 = vector.broadcast %cst_17 : f32 to vector<8x128xf32>
    %25 = arith.mulf %24, %23 : vector<8x128xf32>
    %c0_18 = arith.constant 0 : index
    %c0_19 = arith.constant 0 : index
    %26 = vector.load %arg8[%c0_18, %c0_19] : memref<8x128xf32, #tpu.memory_space<vmem>>, vector<8x128xf32>
    tpu.vector_store %arg8[%c0_18, %c0_19], %25 {strides = array<i32>} : memref<8x128xf32, #tpu.memory_space<vmem>>, vector<8x128xf32>,
    return
  }
  func.func @transform_0(%arg0: i32) -> (i32, i32) {
    %c0_i32 = arith.constant 0 : i32
    %c0_i32_0 = arith.constant 0 : i32
    return %arg0, %c0_i32 : i32, i32
  }
  func.func @transform_1(%arg0: i32) -> (i32, i32) {
    %c0_i32 = arith.constant 0 : i32
    %c0_i32_0 = arith.constant 0 : i32
    %c0_i32_1 = arith.constant 0 : i32
    return %c0_i32, %c0_i32_0 : i32, i32
  }
  func.func @transform_2(%arg0: i32) -> (i32, i32) {
    %c0_i32 = arith.constant 0 : i32
    %c0_i32_0 = arith.constant 0 : i32
    %c0_i32_1 = arith.constant 0 : i32
    return %c0_i32, %c0_i32_0 : i32, i32
  }
  func.func @transform_3(%arg0: i32) -> (i32, i32) {
    %c0_i32 = arith.constant 0 : i32
    %c0_i32_0 = arith.constant 0 : i32
    %c0_i32_1 = arith.constant 0 : i32
    return %c0_i32, %c0_i32_0 : i32, i32
  }
  func.func @transform_4(%arg0: i32) -> (i32, i32) {
    %c0_i32 = arith.constant 0 : i32
    %c0_i32_0 = arith.constant 0 : i32
    %c0_i32_1 = arith.constant 0 : i32
    return %c0_i32, %c0_i32_0 : i32, i32
  }
  func.func @transform_5(%arg0: i32) -> (i32, i32) {
    %c0_i32 = arith.constant 0 : i32
    %c0_i32_0 = arith.constant 0 : i32
    %c0_i32_1 = arith.constant 0 : i32
    return %c0_i32, %c0_i32_0 : i32, i32
  }
  func.func @transform_6(%arg0: i32) -> (i32, i32) {
    %c0_i32 = arith.constant 0 : i32
    %c0_i32_0 = arith.constant 0 : i32
    %c0_i32_1 = arith.constant 0 : i32
    return %c0_i32, %c0_i32_0 : i32, i32
  }
  func.func @transform_7(%arg0: i32) -> (i32, i32) {
    %c0_i32 = arith.constant 0 : i32
    %c0_i32_0 = arith.constant 0 : i32
    return %arg0, %c0_i32 : i32, i32
  }
}

</mosaic_0001>

<llo_original>
// kernel: tpu_custom_call.1
$region0: #{tpu_custom_call.1}
  #allocation0 [shape = 'u32[]', space=smem, size = 0x4, offset = 0x4, fixed_abs, tag = 'smem constant byte address 0x4 - core index']
  #allocation1 [shape = 'u32[72,128]{1,0:T(1,128)}', space=vmem, size = 0x9000, scoped, tag = 'internal scratch']
  %s0 = inlined_call_operand.hbm [shape: f32[8,128], index: 0, kind: input, shape index: {}]
  %s1 = inlined_call_operand.hbm [shape: bf16[128,128], index: 1, kind: input, shape index: {}]
  %s2 = inlined_call_operand.vmem [shape: f32[1,128], index: 2, kind: input, shape index: {}]
  %s3 = inlined_call_operand.hbm [shape: bf16[128,128], index: 3, kind: input, shape index: {}]
  %s4 = inlined_call_operand.vmem [shape: f32[1,128], index: 4, kind: input, shape index: {}]
  %s5 = inlined_call_operand.hbm [shape: bf16[128,128], index: 5, kind: input, shape index: {}]
  %s6 = inlined_call_operand.vmem [shape: f32[1,128], index: 6, kind: input, shape index: {}]
  %s7 = inlined_call_operand.hbm [shape: f32[8,128], index: 7, kind: output, shape index: {}]
  %s8 = sld [smem:[#allocation0]]
  $region54: #{tpu_custom_call.1} parent=0
    _
  %s10 = ssub.s32 1, %s8
  %s11 = scalar_select 0, %s10, %s8
  $region1: #{tpu_custom_call.1} parent=0
    #allocation2 [shape = 'u8[4096]{0}', space=vmem, size = 0x1000, scoped, tag = 'input window, operand 0, single buffered']
    #allocation3 [shape = 's32[1]{0}', space=sflag, size = 0x4, scoped, tag = 'scoped memory for tpu_custom_call.1']
    #allocation4 [shape = 's32[1]{0}', space=sflag, size = 0x4, scoped, tag = 'scoped memory for tpu_custom_call.1']
    #allocation5 [shape = 'u8[32768]{0}', space=vmem, size = 0x8000, scoped, tag = 'input window, operand 1, single buffered']
    #allocation6 [shape = 's32[1]{0}', space=sflag, size = 0x4, scoped, tag = 'scoped memory for tpu_custom_call.1']
    #allocation7 [shape = 'u8[32768]{0}', space=vmem, size = 0x8000, scoped, tag = 'input window, operand 3, single buffered']
    #allocation8 [shape = 'u8[32768]{0}', space=vmem, size = 0x8000, scoped, tag = 'input window, operand 5, single buffered']
    #allocation9 [shape = 's32[1]{0}', space=sflag, size = 0x4, scoped, tag = 'scoped memory for tpu_custom_call.1']
    #allocation10 [shape = 'u8[4096]{0}', space=vmem, size = 0x1000, scoped, tag = 'output window, operand 0, single buffered']
    %12 = vsyncpa [#allocation3], 0
    %13 = vsyncpa [#allocation6], 0
    %14 = vsyncpa [#allocation9], 0
    %15 = vsyncpa [#allocation4], 0
    // Predicated region
    $region2: #{tpu_custom_call.1} parent=1 // pred_check
      _
    $region3: #{tpu_custom_call.1} parent=1 // pred_check_branch
      %17 = sbr.rel (0) target = $region5
    $region4: #{tpu_custom_call.1} parent=1 // pred_region
      %19 = vsyncadd [#allocation3], 0
      %s21 = sshll.u32 %s0, 4
      %s22 = int_to_ptr.hbm [resolvable:$true] %s21
      %s23 = sshll.u32 [#allocation2], 4
      %s24 = int_to_ptr.vmem [resolvable:$true] %s23
      %26 = dma.hbm_to_vmem [thread:$0]  %s22, 128, %s24, [#allocation3]
    $region5: #{tpu_custom_call.1} parent=1 // pred_fallthru
      _
    // Predicated region
    $region6: #{tpu_custom_call.1} parent=1 // pred_check
      _
    $region7: #{tpu_custom_call.1} parent=1 // pred_check_branch
      %28 = sbr.rel (0) target = $region9
    $region8: #{tpu_custom_call.1} parent=1 // pred_region
      %30 = vsyncadd [#allocation6], 0
      %s31 = sshll.u32 %s1, 4
      %s32 = int_to_ptr.hbm [resolvable:$true] %s31
      %s33 = sshll.u32 [#allocation5], 4
      %s34 = int_to_ptr.vmem [resolvable:$true] %s33
      %39 = dma.hbm_to_vmem [thread:$0]  %s32, 1024, %s34, [#allocation6], 64, 64, 4
    $region9: #{tpu_custom_call.1} parent=1 // pred_fallthru
      _
    // Predicated region
    $region10: #{tpu_custom_call.1} parent=1 // pred_check
      _
    $region11: #{tpu_custom_call.1} parent=1 // pred_check_branch
      %41 = sbr.rel (0) target = $region13
    $region12: #{tpu_custom_call.1} parent=1 // pred_region
      _
    $region13: #{tpu_custom_call.1} parent=1 // pred_fallthru
      _
    // Predicated region
    $region14: #{tpu_custom_call.1} parent=1 // pred_check
      _
    $region15: #{tpu_custom_call.1} parent=1 // pred_check_branch
      %43 = sbr.rel (0) target = $region17
    $region16: #{tpu_custom_call.1} parent=1 // pred_region
      %45 = vsyncadd [#allocation6], 0
      %s46 = sshll.u32 %s3, 4
      %s47 = int_to_ptr.hbm [resolvable:$true] %s46
      %s48 = sshll.u32 [#allocation7], 4
      %s49 = int_to_ptr.vmem [resolvable:$true] %s48
      %54 = dma.hbm_to_vmem [thread:$0]  %s47, 1024, %s49, [#allocation6], 64, 64, 4
    $region17: #{tpu_custom_call.1} parent=1 // pred_fallthru
      _
    // Predicated region
    $region18: #{tpu_custom_call.1} parent=1 // pred_check
      _
    $region19: #{tpu_custom_call.1} parent=1 // pred_check_branch
      %56 = sbr.rel (0) target = $region21
    $region20: #{tpu_custom_call.1} parent=1 // pred_region
      _
    $region21: #{tpu_custom_call.1} parent=1 // pred_fallthru
      _
    // Predicated region
    $region22: #{tpu_custom_call.1} parent=1 // pred_check
      _
    $region23: #{tpu_custom_call.1} parent=1 // pred_check_branch
      %58 = sbr.rel (0) target = $region25
    $region24: #{tpu_custom_call.1} parent=1 // pred_region
      %60 = vsyncadd [#allocation9], 0
      %s61 = sshll.u32 %s5, 4
      %s62 = int_to_ptr.hbm [resolvable:$true] %s61
      %s63 = sshll.u32 [#allocation8], 4
      %s64 = int_to_ptr.vmem [resolvable:$true] %s63
      %69 = dma.hbm_to_vmem [thread:$0]  %s62, 1024, %s64, [#allocation9], 64, 64, 4
    $region25: #{tpu_custom_call.1} parent=1 // pred_fallthru
      _
    // Predicated region
    $region26: #{tpu_custom_call.1} parent=1 // pred_check
      _
    $region27: #{tpu_custom_call.1} parent=1 // pred_check_branch
      %71 = sbr.rel (0) target = $region29
    $region28: #{tpu_custom_call.1} parent=1 // pred_region
      _
    $region29: #{tpu_custom_call.1} parent=1 // pred_fallthru
      _
    // Predicated region
    $region30: #{tpu_custom_call.1} parent=1 // pred_check
      _
    $region31: #{tpu_custom_call.1} parent=1 // pred_check_branch
      %73 = sbr.rel (0) target = $region33
    $region32: #{tpu_custom_call.1} parent=1 // pred_region
      %75 = dma.done [#allocation3], 128
    $region33: #{tpu_custom_call.1} parent=1 // pred_fallthru
      _
    // Predicated region
    $region34: #{tpu_custom_call.1} parent=1 // pred_check
      _
    $region35: #{tpu_custom_call.1} parent=1 // pred_check_branch
      %77 = sbr.rel (0) target = $region37
    $region36: #{tpu_custom_call.1} parent=1 // pred_region
      %79 = dma.done [#allocation6], 1024
    $region37: #{tpu_custom_call.1} parent=1 // pred_fallthru
      _
    // Predicated region
    $region38: #{tpu_custom_call.1} parent=1 // pred_check
      _
    $region39: #{tpu_custom_call.1} parent=1 // pred_check_branch
      %81 = sbr.rel (0) target = $region41
    $region40: #{tpu_custom_call.1} parent=1 // pred_region
      %83 = dma.done [#allocation6], 1024
    $region41: #{tpu_custom_call.1} parent=1 // pred_fallthru
      _
    // Predicated region
    $region42: #{tpu_custom_call.1} parent=1 // pred_check
      _
    $region43: #{tpu_custom_call.1} parent=1 // pred_check_branch
      %85 = sbr.rel (0) target = $region45
    $region44: #{tpu_custom_call.1} parent=1 // pred_region
      %87 = dma.done [#allocation9], 1024
    $region45: #{tpu_custom_call.1} parent=1 // pred_fallthru
      _
    %v88 = vld [vmem:[#allocation2] sm:$0xff]
    %v89 = vpack.c.bf16 %v88, %v88
    %v90 = vld [vmem:[#allocation5] sm:$0xf]
    %v91 = vld [vmem:[#allocation5 + $0x4] sm:$0xf]
    %v92 = vld [vmem:[#allocation5 + $0x8] sm:$0xf]
    %v93 = vld [vmem:[#allocation5 + $0xc] sm:$0xf]
    %v94 = vld [vmem:[#allocation5 + $0x10] sm:$0xf]
    %v95 = vld [vmem:[#allocation5 + $0x14] sm:$0xf]
    %v96 = vld [vmem:[#allocation5 + $0x18] sm:$0xf]
    %v97 = vld [vmem:[#allocation5 + $0x1c] sm:$0xf]
    %v98 = vld [vmem:[#allocation5 + $0x20] sm:$0xf]
    %v99 = vld [vmem:[#allocation5 + $0x24] sm:$0xf]
    %v100 = vld [vmem:[#allocation5 + $0x28] sm:$0xf]
    %v101 = vld [vmem:[#allocation5 + $0x2c] sm:$0xf]
    %v102 = vld [vmem:[#allocation5 + $0x30] sm:$0xf]
    %v103 = vld [vmem:[#allocation5 + $0x34] sm:$0xf]
    %v104 = vld [vmem:[#allocation5 + $0x38] sm:$0xf]
    %v105 = vld [vmem:[#allocation5 + $0x3c] sm:$0xf]
    %v106 = vld [vmem:[%s2] sm:$0x1]
    %v108 = vperm.slane %v106, 0
    %v126 = vunpack.c.l.b16 %v90
    %v127 = vunpack.c.l.b16 %v91
    %v128 = vunpack.c.l.b16 %v92
    %v129 = vunpack.c.l.b16 %v93
    %v130 = vunpack.c.l.b16 %v94
    %v131 = vunpack.c.l.b16 %v95
    %v132 = vunpack.c.l.b16 %v96
    %v133 = vunpack.c.l.b16 %v97
    %v134 = vunpack.c.l.b16 %v98
    %v135 = vunpack.c.l.b16 %v99
    %v136 = vunpack.c.l.b16 %v100
    %v137 = vunpack.c.l.b16 %v101
    %v138 = vunpack.c.l.b16 %v102
    %v139 = vunpack.c.l.b16 %v103
    %v140 = vunpack.c.l.b16 %v104
    %v141 = vunpack.c.l.b16 %v105
    %v142 = vpack.c.b16 %v127, %v126
    %v143 = vpack.c.b16 %v129, %v128
    %v144 = vpack.c.b16 %v131, %v130
    %v145 = vpack.c.b16 %v133, %v132
    %v146 = vpack.c.b16 %v135, %v134
    %v147 = vpack.c.b16 %v137, %v136
    %v148 = vpack.c.b16 %v139, %v138
    %v149 = vpack.c.b16 %v141, %v140
    %158 = vmatpush.bf16.msra.mxu0 %v149
    %159 = vmatpush.bf16.msra.mxu0 %v148
    %160 = vmatpush.bf16.msra.mxu0 %v147
    %161 = vmatpush.bf16.msra.mxu0 %v146
    %162 = vmatpush.bf16.msra.mxu0 %v145
    %163 = vmatpush.bf16.msra.mxu0 %v144
    %164 = vmatpush.bf16.msra.mxu0 %v143
    %165 = vmatpush.bf16.msra.mxu0 %v142
    %166 = vmatmul.bf16.gmra.mxu0 %v89
    %v167 = vpop.f32.mrf.mxu0
    %v168 = vadd.f32 %v108, %v167
    %v169 = vpop.f32.mrf.mxu0
    %170 = vdwg.mxu0
    %v171 = vmax.f32 %v168, 0.0
    %v172 = vpack.c.bf16 %v171, %v171
    %v173 = vld [vmem:[#allocation7] sm:$0xf]
    %v174 = vld [vmem:[#allocation7 + $0x4] sm:$0xf]
    %v175 = vld [vmem:[#allocation7 + $0x8] sm:$0xf]
    %v176 = vld [vmem:[#allocation7 + $0xc] sm:$0xf]
    %v177 = vld [vmem:[#allocation7 + $0x10] sm:$0xf]
    %v178 = vld [vmem:[#allocation7 + $0x14] sm:$0xf]
    %v179 = vld [vmem:[#allocation7 + $0x18] sm:$0xf]
    %v180 = vld [vmem:[#allocation7 + $0x1c] sm:$0xf]
    %v181 = vld [vmem:[#allocation7 + $0x20] sm:$0xf]
    %v182 = vld [vmem:[#allocation7 + $0x24] sm:$0xf]
    %v183 = vld [vmem:[#allocation7 + $0x28] sm:$0xf]
    %v184 = vld [vmem:[#allocation7 + $0x2c] sm:$0xf]
    %v185 = vld [vmem:[#allocation7 + $0x30] sm:$0xf]
    %v186 = vld [vmem:[#allocation7 + $0x34] sm:$0xf]
    %v187 = vld [vmem:[#allocation7 + $0x38] sm:$0xf]
    %v188 = vld [vmem:[#allocation7 + $0x3c] sm:$0xf]
    %v189 = vld [vmem:[%s4] sm:$0x1]
    %v191 = vperm.slane %v189, 0
    %v209 = vunpack.c.l.b16 %v173
    %v210 = vunpack.c.l.b16 %v174
    %v211 = vunpack.c.l.b16 %v175
    %v212 = vunpack.c.l.b16 %v176
    %v213 = vunpack.c.l.b16 %v177
    %v214 = vunpack.c.l.b16 %v178
    %v215 = vunpack.c.l.b16 %v179
    %v216 = vunpack.c.l.b16 %v180
    %v217 = vunpack.c.l.b16 %v181
    %v218 = vunpack.c.l.b16 %v182
    %v219 = vunpack.c.l.b16 %v183
    %v220 = vunpack.c.l.b16 %v184
    %v221 = vunpack.c.l.b16 %v185
    %v222 = vunpack.c.l.b16 %v186
    %v223 = vunpack.c.l.b16 %v187
    %v224 = vunpack.c.l.b16 %v188
    %v225 = vpack.c.b16 %v210, %v209
    %v226 = vpack.c.b16 %v212, %v211
    %v227 = vpack.c.b16 %v214, %v213
    %v228 = vpack.c.b16 %v216, %v215
    %v229 = vpack.c.b16 %v218, %v217
    %v230 = vpack.c.b16 %v220, %v219
    %v231 = vpack.c.b16 %v222, %v221
    %v232 = vpack.c.b16 %v224, %v223
    %241 = vmatpush.bf16.msra.mxu0 %v232
    %242 = vmatpush.bf16.msra.mxu0 %v231
    %243 = vmatpush.bf16.msra.mxu0 %v230
    %244 = vmatpush.bf16.msra.mxu0 %v229
    %245 = vmatpush.bf16.msra.mxu0 %v228
    %246 = vmatpush.bf16.msra.mxu0 %v227
    %247 = vmatpush.bf16.msra.mxu0 %v226
    %248 = vmatpush.bf16.msra.mxu0 %v225
    %249 = vmatmul.bf16.gmra.mxu0 %v172
    %v250 = vpop.f32.mrf.mxu0
    %v251 = vadd.f32 %v191, %v250
    %v252 = vpop.f32.mrf.mxu0
    %253 = vdwg.mxu0
    %v254 = vmax.f32 %v251, 0.0
    %v255 = vpack.c.bf16 %v254, %v254
    %v256 = vld [vmem:[#allocation8] sm:$0xf]
    %v257 = vld [vmem:[#allocation8 + $0x4] sm:$0xf]
    %v258 = vld [vmem:[#allocation8 + $0x8] sm:$0xf]
    %v259 = vld [vmem:[#allocation8 + $0xc] sm:$0xf]
    %v260 = vld [vmem:[#allocation8 + $0x10] sm:$0xf]
    %v261 = vld [vmem:[#allocation8 + $0x14] sm:$0xf]
    %v262 = vld [vmem:[#allocation8 + $0x18] sm:$0xf]
    %v263 = vld [vmem:[#allocation8 + $0x1c] sm:$0xf]
    %v264 = vld [vmem:[#allocation8 + $0x20] sm:$0xf]
    %v265 = vld [vmem:[#allocation8 + $0x24] sm:$0xf]
    %v266 = vld [vmem:[#allocation8 + $0x28] sm:$0xf]
    %v267 = vld [vmem:[#allocation8 + $0x2c] sm:$0xf]
    %v268 = vld [vmem:[#allocation8 + $0x30] sm:$0xf]
    %v269 = vld [vmem:[#allocation8 + $0x34] sm:$0xf]
    %v270 = vld [vmem:[#allocation8 + $0x38] sm:$0xf]
    %v271 = vld [vmem:[#allocation8 + $0x3c] sm:$0xf]
    %v272 = vld [vmem:[%s6] sm:$0x1]
    %v274 = vperm.slane %v272, 0
    %v292 = vunpack.c.l.b16 %v256
    %v293 = vunpack.c.l.b16 %v257
    %v294 = vunpack.c.l.b16 %v258
    %v295 = vunpack.c.l.b16 %v259
    %v296 = vunpack.c.l.b16 %v260
    %v297 = vunpack.c.l.b16 %v261
    %v298 = vunpack.c.l.b16 %v262
    %v299 = vunpack.c.l.b16 %v263
    %v300 = vunpack.c.l.b16 %v264
    %v301 = vunpack.c.l.b16 %v265
    %v302 = vunpack.c.l.b16 %v266
    %v303 = vunpack.c.l.b16 %v267
    %v304 = vunpack.c.l.b16 %v268
    %v305 = vunpack.c.l.b16 %v269
    %v306 = vunpack.c.l.b16 %v270
    %v307 = vunpack.c.l.b16 %v271
    %v308 = vpack.c.b16 %v293, %v292
    %v309 = vpack.c.b16 %v295, %v294
    %v310 = vpack.c.b16 %v297, %v296
    %v311 = vpack.c.b16 %v299, %v298
    %v312 = vpack.c.b16 %v301, %v300
    %v313 = vpack.c.b16 %v303, %v302
    %v314 = vpack.c.b16 %v305, %v304
    %v315 = vpack.c.b16 %v307, %v306
    %324 = vmatpush.bf16.msra.mxu0 %v315
    %325 = vmatpush.bf16.msra.mxu0 %v314
    %326 = vmatpush.bf16.msra.mxu0 %v313
    %327 = vmatpush.bf16.msra.mxu0 %v312
    %328 = vmatpush.bf16.msra.mxu0 %v311
    %329 = vmatpush.bf16.msra.mxu0 %v310
    %330 = vmatpush.bf16.msra.mxu0 %v309
    %331 = vmatpush.bf16.msra.mxu0 %v308
    %332 = vmatmul.bf16.gmra.mxu0 %v255
    %v333 = vpop.f32.mrf.mxu0
    %v334 = vadd.f32 %v274, %v333
    %v335 = vpop.f32.mrf.mxu0
    %336 = vdwg.mxu0
    %v337 = vtanh.pop %v334
    %v338 = vmul.f32 %v337, 1.5
    %339 = vst [vmem:[#allocation10] sm:$0xff] %v338
    // Predicated region
    $region46: #{tpu_custom_call.1} parent=1 // pred_check
      _
    $region47: #{tpu_custom_call.1} parent=1 // pred_check_branch
      %341 = sbr.rel (0) target = $region49
    $region48: #{tpu_custom_call.1} parent=1 // pred_region
      %343 = vsyncadd [#allocation4], 0
      %s345 = sshll.u32 [#allocation10], 4
      %s346 = int_to_ptr.vmem [resolvable:$true] %s345
      %s347 = sshll.u32 %s7, 4
      %s348 = int_to_ptr.hbm [resolvable:$true] %s347
      %350 = dma.vmem_to_hbm [thread:$0]  %s346, 128, %s348, [#allocation4]
    $region49: #{tpu_custom_call.1} parent=1 // pred_fallthru
      _
    // Predicated region
    $region50: #{tpu_custom_call.1} parent=1 // pred_check
      _
    $region51: #{tpu_custom_call.1} parent=1 // pred_check_branch
      %352 = sbr.rel (0) target = $region53
    $region52: #{tpu_custom_call.1} parent=1 // pred_region
      %354 = dma.done [#allocation4], 128
    $region53: #{tpu_custom_call.1} parent=1 // pred_fallthru
      _
    %355 = vsyncpa [#allocation3], 1
    %356 = vsyncpa [#allocation6], 1
    %357 = vsyncpa [#allocation9], 1
    %358 = vsyncpa [#allocation4], 1

// kernel: tpu_custom_call.1
$region0: #{tpu_custom_call.1}
  #allocation0 [shape = 'u32[]', space=smem, size = 0x4, offset = 0x4, fixed_abs, tag = 'smem constant byte address 0x4 - core index']
  #allocation1 [shape = 'u32[72,128]{1,0:T(1,128)}', space=vmem, size = 0x9000, scoped, tag = 'internal scratch']
  %s0 = inlined_call_operand.hbm [shape: f32[8,128], index: 0, kind: input, shape index: {}]
  %s1 = inlined_call_operand.hbm [shape: bf16[128,128], index: 1, kind: input, shape index: {}]
  %s2 = inlined_call_operand.vmem [shape: f32[1,128], index: 2, kind: input, shape index: {}]
  %s3 = inlined_call_operand.hbm [shape: bf16[128,128], index: 3, kind: input, shape index: {}]
  %s4 = inlined_call_operand.vmem [shape: f32[1,128], index: 4, kind: input, shape index: {}]
  %s5 = inlined_call_operand.hbm [shape: bf16[128,128], index: 5, kind: input, shape index: {}]
  %s6 = inlined_call_operand.vmem [shape: f32[1,128], index: 6, kind: input, shape index: {}]
  %s7 = inlined_call_operand.hbm [shape: f32[8,128], index: 7, kind: output, shape index: {}]
  %s8 = sld [smem:[#allocation0]]
  $region54: #{tpu_custom_call.1} parent=0
    _
  %s10 = ssub.s32 1, %s8
  %s11 = scalar_select 0, %s10, %s8
  $region1: #{tpu_custom_call.1} parent=0
    #allocation2 [shape = 'u8[4096]{0}', space=vmem, size = 0x1000, scoped, tag = 'input window, operand 0, single buffered']
    #allocation3 [shape = 's32[1]{0}', space=sflag, size = 0x4, scoped, tag = 'scoped memory for tpu_custom_call.1']
    #allocation4 [shape = 's32[1]{0}', space=sflag, size = 0x4, scoped, tag = 'scoped memory for tpu_custom_call.1']
    #allocation5 [shape = 'u8[32768]{0}', space=vmem, size = 0x8000, scoped, tag = 'input window, operand 1, single buffered']
    #allocation6 [shape = 's32[1]{0}', space=sflag, size = 0x4, scoped, tag = 'scoped memory for tpu_custom_call.1']
    #allocation7 [shape = 'u8[32768]{0}', space=vmem, size = 0x8000, scoped, tag = 'input window, operand 3, single buffered']
    #allocation8 [shape = 'u8[32768]{0}', space=vmem, size = 0x8000, scoped, tag = 'input window, operand 5, single buffered']
    #allocation9 [shape = 's32[1]{0}', space=sflag, size = 0x4, scoped, tag = 'scoped memory for tpu_custom_call.1']
    #allocation10 [shape = 'u8[4096]{0}', space=vmem, size = 0x1000, scoped, tag = 'output window, operand 0, single buffered']
    %12 = vsyncpa [#allocation3], 0
    %13 = vsyncpa [#allocation6], 0
    %14 = vsyncpa [#allocation9], 0
    %15 = vsyncpa [#allocation4], 0
    // Predicated region
    $region2: #{tpu_custom_call.1} parent=1 // pred_check
      _
    $region3: #{tpu_custom_call.1} parent=1 // pred_check_branch
      %17 = sbr.rel (0) target = $region5
    $region4: #{tpu_custom_call.1} parent=1 // pred_region
      %19 = vsyncadd [#allocation3], 0
      %s21 = sshll.u32 %s0, 4
      %s22 = int_to_ptr.hbm [resolvable:$true] %s21
      %s23 = sshll.u32 [#allocation2], 4
      %s24 = int_to_ptr.vmem [resolvable:$true] %s23
      %26 = dma.hbm_to_vmem [thread:$0]  %s22, 128, %s24, [#allocation3]
    $region5: #{tpu_custom_call.1} parent=1 // pred_fallthru
      _
    // Predicated region
    $region6: #{tpu_custom_call.1} parent=1 // pred_check
      _
    $region7: #{tpu_custom_call.1} parent=1 // pred_check_branch
      %28 = sbr.rel (0) target = $region9
    $region8: #{tpu_custom_call.1} parent=1 // pred_region
      %30 = vsyncadd [#allocation6], 0
      %s31 = sshll.u32 %s1, 4
      %s32 = int_to_ptr.hbm [resolvable:$true] %s31
      %s33 = sshll.u32 [#allocation5], 4
      %s34 = int_to_ptr.vmem [resolvable:$true] %s33
      %39 = dma.hbm_to_vmem [thread:$0]  %s32, 1024, %s34, [#allocation6], 64, 64, 4
    $region9: #{tpu_custom_call.1} parent=1 // pred_fallthru
      _
    // Predicated region
    $region10: #{tpu_custom_call.1} parent=1 // pred_check
      _
    $region11: #{tpu_custom_call.1} parent=1 // pred_check_branch
      %41 = sbr.rel (0) target = $region13
    $region12: #{tpu_custom_call.1} parent=1 // pred_region
      _
    $region13: #{tpu_custom_call.1} parent=1 // pred_fallthru
      _
    // Predicated region
    $region14: #{tpu_custom_call.1} parent=1 // pred_check
      _
    $region15: #{tpu_custom_call.1} parent=1 // pred_check_branch
      %43 = sbr.rel (0) target = $region17
    $region16: #{tpu_custom_call.1} parent=1 // pred_region
      %45 = vsyncadd [#allocation6], 0
      %s46 = sshll.u32 %s3, 4
      %s47 = int_to_ptr.hbm [resolvable:$true] %s46
      %s48 = sshll.u32 [#allocation7], 4
      %s49 = int_to_ptr.vmem [resolvable:$true] %s48
      %54 = dma.hbm_to_vmem [thread:$0]  %s47, 1024, %s49, [#allocation6], 64, 64, 4
    $region17: #{tpu_custom_call.1} parent=1 // pred_fallthru
      _
    // Predicated region
    $region18: #{tpu_custom_call.1} parent=1 // pred_check
      _
    $region19: #{tpu_custom_call.1} parent=1 // pred_check_branch
      %56 = sbr.rel (0) target = $region21
    $region20: #{tpu_custom_call.1} parent=1 // pred_region
      _
    $region21: #{tpu_custom_call.1} parent=1 // pred_fallthru
      _
    // Predicated region
    $region22: #{tpu_custom_call.1} parent=1 // pred_check
      _
    $region23: #{tpu_custom_call.1} parent=1 // pred_check_branch
      %58 = sbr.rel (0) target = $region25
    $region24: #{tpu_custom_call.1} parent=1 // pred_region
      %60 = vsyncadd [#allocation9], 0
      %s61 = sshll.u32 %s5, 4
      %s62 = int_to_ptr.hbm [resolvable:$true] %s61
      %s63 = sshll.u32 [#allocation8], 4
      %s64 = int_to_ptr.vmem [resolvable:$true] %s63
      %69 = dma.hbm_to_vmem [thread:$0]  %s62, 1024, %s64, [#allocation9], 64, 64, 4
    $region25: #{tpu_custom_call.1} parent=1 // pred_fallthru
      _
    // Predicated region
    $region26: #{tpu_custom_call.1} parent=1 // pred_check
      _
    $region27: #{tpu_custom_call.1} parent=1 // pred_check_branch
      %71 = sbr.rel (0) target = $region29
    $region28: #{tpu_custom_call.1} parent=1 // pred_region
      _
    $region29: #{tpu_custom_call.1} parent=1 // pred_fallthru
      _
    // Predicated region
    $region30: #{tpu_custom_call.1} parent=1 // pred_check
      _
    $region31: #{tpu_custom_call.1} parent=1 // pred_check_branch
      %73 = sbr.rel (0) target = $region33
    $region32: #{tpu_custom_call.1} parent=1 // pred_region
      %75 = dma.done [#allocation3], 128
    $region33: #{tpu_custom_call.1} parent=1 // pred_fallthru
      _
    // Predicated region
    $region34: #{tpu_custom_call.1} parent=1 // pred_check
      _
    $region35: #{tpu_custom_call.1} parent=1 // pred_check_branch
      %77 = sbr.rel (0) target = $region37
    $region36: #{tpu_custom_call.1} parent=1 // pred_region
      %79 = dma.done [#allocation6], 1024
    $region37: #{tpu_custom_call.1} parent=1 // pred_fallthru
      _
    // Predicated region
    $region38: #{tpu_custom_call.1} parent=1 // pred_check
      _
    $region39: #{tpu_custom_call.1} parent=1 // pred_check_branch
      %81 = sbr.rel (0) target = $region41
    $region40: #{tpu_custom_call.1} parent=1 // pred_region
      %83 = dma.done [#allocation6], 1024
    $region41: #{tpu_custom_call.1} parent=1 // pred_fallthru
      _
    // Predicated region
    $region42: #{tpu_custom_call.1} parent=1 // pred_check
      _
    $region43: #{tpu_custom_call.1} parent=1 // pred_check_branch
      %85 = sbr.rel (0) target = $region45
    $region44: #{tpu_custom_call.1} parent=1 // pred_region
      %87 = dma.done [#allocation9], 1024
    $region45: #{tpu_custom_call.1} parent=1 // pred_fallthru
      _
    %v88 = vld [vmem:[#allocation2] sm:$0xff]
    %v89 = vpack.c.bf16 %v88, %v88
    %v90 = vld [vmem:[#allocation5] sm:$0xf]
    %v91 = vld [vmem:[#allocation5 + $0x4] sm:$0xf]
    %v92 = vld [vmem:[#allocation5 + $0x8] sm:$0xf]
    %v93 = vld [vmem:[#allocation5 + $0xc] sm:$0xf]
    %v94 = vld [vmem:[#allocation5 + $0x10] sm:$0xf]
    %v95 = vld [vmem:[#allocation5 + $0x14] sm:$0xf]
    %v96 = vld [vmem:[#allocation5 + $0x18] sm:$0xf]
    %v97 = vld [vmem:[#allocation5 + $0x1c] sm:$0xf]
    %v98 = vld [vmem:[#allocation5 + $0x20] sm:$0xf]
    %v99 = vld [vmem:[#allocation5 + $0x24] sm:$0xf]
    %v100 = vld [vmem:[#allocation5 + $0x28] sm:$0xf]
    %v101 = vld [vmem:[#allocation5 + $0x2c] sm:$0xf]
    %v102 = vld [vmem:[#allocation5 + $0x30] sm:$0xf]
    %v103 = vld [vmem:[#allocation5 + $0x34] sm:$0xf]
    %v104 = vld [vmem:[#allocation5 + $0x38] sm:$0xf]
    %v105 = vld [vmem:[#allocation5 + $0x3c] sm:$0xf]
    %v106 = vld [vmem:[%s2] sm:$0x1]
    %v108 = vperm.slane %v106, 0
    %v126 = vunpack.c.l.b16 %v90
    %v127 = vunpack.c.l.b16 %v91
    %v128 = vunpack.c.l.b16 %v92
    %v129 = vunpack.c.l.b16 %v93
    %v130 = vunpack.c.l.b16 %v94
    %v131 = vunpack.c.l.b16 %v95
    %v132 = vunpack.c.l.b16 %v96
    %v133 = vunpack.c.l.b16 %v97
    %v134 = vunpack.c.l.b16 %v98
    %v135 = vunpack.c.l.b16 %v99
    %v136 = vunpack.c.l.b16 %v100
    %v137 = vunpack.c.l.b16 %v101
    %v138 = vunpack.c.l.b16 %v102
    %v139 = vunpack.c.l.b16 %v103
    %v140 = vunpack.c.l.b16 %v104
    %v141 = vunpack.c.l.b16 %v105
    %v142 = vpack.c.b16 %v127, %v126
    %v143 = vpack.c.b16 %v129, %v128
    %v144 = vpack.c.b16 %v131, %v130
    %v145 = vpack.c.b16 %v133, %v132
    %v146 = vpack.c.b16 %v135, %v134
    %v147 = vpack.c.b16 %v137, %v136
    %v148 = vpack.c.b16 %v139, %v138
    %v149 = vpack.c.b16 %v141, %v140
    %158 = vmatpush.bf16.msra.mxu0 %v149
    %159 = vmatpush.bf16.msra.mxu0 %v148
    %160 = vmatpush.bf16.msra.mxu0 %v147
    %161 = vmatpush.bf16.msra.mxu0 %v146
    %162 = vmatpush.bf16.msra.mxu0 %v145
    %163 = vmatpush.bf16.msra.mxu0 %v144
    %164 = vmatpush.bf16.msra.mxu0 %v143
    %165 = vmatpush.bf16.msra.mxu0 %v142
    %166 = vmatmul.bf16.gmra.mxu0 %v89
    %v167 = vpop.f32.mrf.mxu0
    %v168 = vadd.f32 %v108, %v167
    %v169 = vpop.f32.mrf.mxu0
    %170 = vdwg.mxu0
    %v171 = vmax.f32 %v168, 0.0
    %v172 = vpack.c.bf16 %v171, %v171
    %v173 = vld [vmem:[#allocation7] sm:$0xf]
    %v174 = vld [vmem:[#allocation7 + $0x4] sm:$0xf]
    %v175 = vld [vmem:[#allocation7 + $0x8] sm:$0xf]
    %v176 = vld [vmem:[#allocation7 + $0xc] sm:$0xf]
    %v177 = vld [vmem:[#allocation7 + $0x10] sm:$0xf]
    %v178 = vld [vmem:[#allocation7 + $0x14] sm:$0xf]
    %v179 = vld [vmem:[#allocation7 + $0x18] sm:$0xf]
    %v180 = vld [vmem:[#allocation7 + $0x1c] sm:$0xf]
    %v181 = vld [vmem:[#allocation7 + $0x20] sm:$0xf]
    %v182 = vld [vmem:[#allocation7 + $0x24] sm:$0xf]
    %v183 = vld [vmem:[#allocation7 + $0x28] sm:$0xf]
    %v184 = vld [vmem:[#allocation7 + $0x2c] sm:$0xf]
    %v185 = vld [vmem:[#allocation7 + $0x30] sm:$0xf]
    %v186 = vld [vmem:[#allocation7 + $0x34] sm:$0xf]
    %v187 = vld [vmem:[#allocation7 + $0x38] sm:$0xf]
    %v188 = vld [vmem:[#allocation7 + $0x3c] sm:$0xf]
    %v189 = vld [vmem:[%s4] sm:$0x1]
    %v191 = vperm.slane %v189, 0
    %v209 = vunpack.c.l.b16 %v173
    %v210 = vunpack.c.l.b16 %v174
    %v211 = vunpack.c.l.b16 %v175
    %v212 = vunpack.c.l.b16 %v176
    %v213 = vunpack.c.l.b16 %v177
    %v214 = vunpack.c.l.b16 %v178
    %v215 = vunpack.c.l.b16 %v179
    %v216 = vunpack.c.l.b16 %v180
    %v217 = vunpack.c.l.b16 %v181
    %v218 = vunpack.c.l.b16 %v182
    %v219 = vunpack.c.l.b16 %v183
    %v220 = vunpack.c.l.b16 %v184
    %v221 = vunpack.c.l.b16 %v185
    %v222 = vunpack.c.l.b16 %v186
    %v223 = vunpack.c.l.b16 %v187
    %v224 = vunpack.c.l.b16 %v188
    %v225 = vpack.c.b16 %v210, %v209
    %v226 = vpack.c.b16 %v212, %v211
    %v227 = vpack.c.b16 %v214, %v213
    %v228 = vpack.c.b16 %v216, %v215
    %v229 = vpack.c.b16 %v218, %v217
    %v230 = vpack.c.b16 %v220, %v219
    %v231 = vpack.c.b16 %v222, %v221
    %v232 = vpack.c.b16 %v224, %v223
    %241 = vmatpush.bf16.msra.mxu0 %v232
    %242 = vmatpush.bf16.msra.mxu0 %v231
    %243 = vmatpush.bf16.msra.mxu0 %v230
    %244 = vmatpush.bf16.msra.mxu0 %v229
    %245 = vmatpush.bf16.msra.mxu0 %v228
    %246 = vmatpush.bf16.msra.mxu0 %v227
    %247 = vmatpush.bf16.msra.mxu0 %v226
    %248 = vmatpush.bf16.msra.mxu0 %v225
    %249 = vmatmul.bf16.gmra.mxu0 %v172
    %v250 = vpop.f32.mrf.mxu0
    %v251 = vadd.f32 %v191, %v250
    %v252 = vpop.f32.mrf.mxu0
    %253 = vdwg.mxu0
    %v254 = vmax.f32 %v251, 0.0
    %v255 = vpack.c.bf16 %v254, %v254
    %v256 = vld [vmem:[#allocation8] sm:$0xf]
    %v257 = vld [vmem:[#allocation8 + $0x4] sm:$0xf]
    %v258 = vld [vmem:[#allocation8 + $0x8] sm:$0xf]
    %v259 = vld [vmem:[#allocation8 + $0xc] sm:$0xf]
    %v260 = vld [vmem:[#allocation8 + $0x10] sm:$0xf]
    %v261 = vld [vmem:[#allocation8 + $0x14] sm:$0xf]
    %v262 = vld [vmem:[#allocation8 + $0x18] sm:$0xf]
    %v263 = vld [vmem:[#allocation8 + $0x1c] sm:$0xf]
    %v264 = vld [vmem:[#allocation8 + $0x20] sm:$0xf]
    %v265 = vld [vmem:[#allocation8 + $0x24] sm:$0xf]
    %v266 = vld [vmem:[#allocation8 + $0x28] sm:$0xf]
    %v267 = vld [vmem:[#allocation8 + $0x2c] sm:$0xf]
    %v268 = vld [vmem:[#allocation8 + $0x30] sm:$0xf]
    %v269 = vld [vmem:[#allocation8 + $0x34] sm:$0xf]
    %v270 = vld [vmem:[#allocation8 + $0x38] sm:$0xf]
    %v271 = vld [vmem:[#allocation8 + $0x3c] sm:$0xf]
    %v272 = vld [vmem:[%s6] sm:$0x1]
    %v274 = vperm.slane %v272, 0
    %v292 = vunpack.c.l.b16 %v256
    %v293 = vunpack.c.l.b16 %v257
    %v294 = vunpack.c.l.b16 %v258
    %v295 = vunpack.c.l.b16 %v259
    %v296 = vunpack.c.l.b16 %v260
    %v297 = vunpack.c.l.b16 %v261
    %v298 = vunpack.c.l.b16 %v262
    %v299 = vunpack.c.l.b16 %v263
    %v300 = vunpack.c.l.b16 %v264
    %v301 = vunpack.c.l.b16 %v265
    %v302 = vunpack.c.l.b16 %v266
    %v303 = vunpack.c.l.b16 %v267
    %v304 = vunpack.c.l.b16 %v268
    %v305 = vunpack.c.l.b16 %v269
    %v306 = vunpack.c.l.b16 %v270
    %v307 = vunpack.c.l.b16 %v271
    %v308 = vpack.c.b16 %v293, %v292
    %v309 = vpack.c.b16 %v295, %v294
    %v310 = vpack.c.b16 %v297, %v296
    %v311 = vpack.c.b16 %v299, %v298
    %v312 = vpack.c.b16 %v301, %v300
    %v313 = vpack.c.b16 %v303, %v302
    %v314 = vpack.c.b16 %v305, %v304
    %v315 = vpack.c.b16 %v307, %v306
    %324 = vmatpush.bf16.msra.mxu0 %v315
    %325 = vmatpush.bf16.msra.mxu0 %v314
    %326 = vmatpush.bf16.msra.mxu0 %v313
    %327 = vmatpush.bf16.msra.mxu0 %v312
    %328 = vmatpush.bf16.msra.mxu0 %v311
    %329 = vmatpush.bf16.msra.mxu0 %v310
    %330 = vmatpush.bf16.msra.mxu0 %v309
    %331 = vmatpush.bf16.msra.mxu0 %v308
    %332 = vmatmul.bf16.gmra.mxu0 %v255
    %v333 = vpop.f32.mrf.mxu0
    %v334 = vadd.f32 %v274, %v333
    %v335 = vpop.f32.mrf.mxu0
    %336 = vdwg.mxu0
    %v337 = vtanh.pop %v334
    %v338 = vmul.f32 %v337, 1.5
    %339 = vst [vmem:[#allocation10] sm:$0xff] %v338
    // Predicated region
    $region46: #{tpu_custom_call.1} parent=1 // pred_check
      _
    $region47: #{tpu_custom_call.1} parent=1 // pred_check_branch
      %341 = sbr.rel (0) target = $region49
    $region48: #{tpu_custom_call.1} parent=1 // pred_region
      %343 = vsyncadd [#allocation4], 0
      %s345 = sshll.u32 [#allocation10], 4
      %s346 = int_to_ptr.vmem [resolvable:$true] %s345
      %s347 = sshll.u32 %s7, 4
      %s348 = int_to_ptr.hbm [resolvable:$true] %s347
      %350 = dma.vmem_to_hbm [thread:$0]  %s346, 128, %s348, [#allocation4]
    $region49: #{tpu_custom_call.1} parent=1 // pred_fallthru
      _
    // Predicated region
    $region50: #{tpu_custom_call.1} parent=1 // pred_check
      _
    $region51: #{tpu_custom_call.1} parent=1 // pred_check_branch
      %352 = sbr.rel (0) target = $region53
    $region52: #{tpu_custom_call.1} parent=1 // pred_region
      %354 = dma.done [#allocation4], 128
    $region53: #{tpu_custom_call.1} parent=1 // pred_fallthru
      _
    %355 = vsyncpa [#allocation3], 1
    %356 = vsyncpa [#allocation6], 1
    %357 = vsyncpa [#allocation9], 1
    %358 = vsyncpa [#allocation4], 1

</llo_original>
